<compile_context>
chip_gen: v7x
topology: tpu7x:2x2x1
jax: 0.10.0
libtpu: 0.0.40
codegen_flags: <defaults>
</compile_context>

<pallas_src>
import functools

import jax
import jax.numpy as jnp
from jax import lax
from jax.experimental import pallas as pl
from jax.experimental.pallas import tpu as pltpu


def _blurpool_conv_kernel(x_ref, w_ref, b_ref, cm_ref, o_ref, pad_ref, taps_ref,
                          *, width, b_blk, cin_pad):
    # x_ref    : [B_blk*Cin_pad, HW]            rows = (batch, channel), lane-dense HW
    # w_ref    : [Cout, 9*Cin_pad]   (bf16)     conv weight, K ordered (ky, kx, c)
    # b_ref    : [Cout, 1]                      conv bias
    # cm_ref   : [2, HW]                        column-validity masks for dx = -1 / +1
    # o_ref    : [B_blk, Cout, HW]              output slab (lane-dense store)
    # pad_ref  : [B_blk*Cin_pad, HW + 2*(W+1)]  scratch: zero-margin flat staging buffer
    # taps_ref : [9*Cin_pad, B_blk*HW] (bf16)   scratch: MXU contraction RHS
    hw = x_ref.shape[-1]
    w = width
    pad = w + 1                               # max |flat shift| is W + 1 (dy=+-1, dx=+-1)
    rows = x_ref.shape[0]                     # B_blk * Cin_pad

    cm_l = cm_ref[0:1, :]                     # zero where x-col == 0      (dx = -1)
    cm_r = cm_ref[1:2, :]                     # zero where x-col == W - 1  (dx = +1)

    # Only the two margins are ever read as zeros and they are never overwritten,
    # so zero just those slices (not the whole buffer) every step.  Do NOT gate this
    # on program_id==0 while the grid axis is "parallel".
    pad_ref[:, 0:pad] = jnp.zeros((rows, pad), jnp.float32)
    pad_ref[:, pad + hw:pad + hw + pad] = jnp.zeros((rows, pad), jnp.float32)

    def shifted(dy, dx, r0, nr):
        # Value currently staged in pad_ref (rows [r0, r0+nr)), shifted by (dy, dx) with
        # 2-D zero padding.  Row over/underflow lands in the flat zero margins; the
        # column wrap for dx = +-1 needs the precomputed mask.
        s = dy * w + dx
        t = pad_ref[r0:r0 + nr, pad + s: pad + s + hw]       # static, lane-dense slice
        if dx == -1:
            t = t * cm_l
        elif dx == 1:
            t = t * cm_r
        return t

    # ---- stage 1: depthwise blur, separable (1,2,1) x (1,2,1) / 16, zero padding 1 ----
    x = x_ref[...]                                           # [rows, HW]
    pad_ref[:, pad:pad + hw] = x
    v = shifted(-1, 0, 0, rows) + 2.0 * x + shifted(1, 0, 0, rows)        # vertical
    pad_ref[:, pad:pad + hw] = v
    blurred = (shifted(0, -1, 0, rows) + 2.0 * v + shifted(0, 1, 0, rows)) * (1.0 / 16.0)
    pad_ref[:, pad:pad + hw] = blurred

    # ---- stage 2: dense 3x3 conv (pad 1) as ONE MXU contraction, K = 9*Cin_pad --------
    # Build the bf16 RHS: one lane-aligned column block of width HW per batch element,
    # rows grouped by tap (ky, kx) then channel.  Each store is a single aligned slab.
    for b in range(b_blk):
        r0 = b * cin_pad
        taps = [shifted(ky - 1, kx - 1, r0, cin_pad)
                for ky in range(3) for kx in range(3)]
        taps_ref[:, b * hw:(b + 1) * hw] = (
            jnp.concatenate(taps, axis=0).astype(taps_ref.dtype))

    # bf16 x bf16 single MXU pass, f32 accumulate.
    acc = jnp.dot(w_ref[...], taps_ref[...],
                  preferred_element_type=jnp.float32)        # [Cout, B_blk*HW]
    bias = b_ref[...]                                        # [Cout, 1]
    for b in range(b_blk):
        o_ref[b] = (acc[:, b * hw:(b + 1) * hw] + bias).astype(o_ref.dtype)


def blurpool_conv2d(x, conv_w, conv_b, *, block_batch=8):
    """BlurPoolConv2d forward: depthwise 3x3 blur (pad=1) -> Conv2d(3x3, s=1, p=1, bias)."""
    N, Cin, H, W = x.shape
    Cout = conv_w.shape[0]
    HW = H * W
    assert HW % 128 == 0, "lane-dense layout needs H*W to be a multiple of 128"
    # TODO(synk): add an HW grid axis (lane-aligned tiles) for large images / non-128-multiple H*W.

    cin_pad = ((Cin + 7) // 8) * 8            # fill all 8 sublanes of every f32 vreg

    # Batch block: largest divisor of N <= block_batch that fits a conservative VMEM
    # budget (v7x default scoped VMEM is 32 MiB of a 64 MiB total).
    def _fits(bb):
        pad_bytes = bb * cin_pad * (HW + 2 * (W + 1)) * 4
        taps_bytes = 9 * cin_pad * bb * HW * 2
        io_bytes = 2 * bb * cin_pad * HW * 4 + 2 * bb * Cout * HW * 4   # double-buffered blocks
        return pad_bytes + taps_bytes + io_bytes <= 24 * (1 << 20)

    b_blk = max(1, min(block_batch, N))
    while b_blk > 1 and (N % b_blk != 0 or not _fits(b_blk)):
        b_blk -= 1

    # x: [N, Cin, H, W] -> rows (n, c) lane-dense over HW, channels zero-padded to cin_pad.
    xf = x.astype(jnp.float32).reshape(N, Cin, HW)
    xf = jnp.pad(xf, ((0, 0), (0, cin_pad - Cin), (0, 0))).reshape(N * cin_pad, HW)

    # Conv weight: K ordered (ky, kx, c) with zero-padded channel columns; bf16 operand
    # for a single-pass MXU matmul (f32 accumulation via preferred_element_type).
    w2 = jnp.pad(conv_w.astype(jnp.float32),
                 ((0, 0), (0, cin_pad - Cin), (0, 0), (0, 0)))
    w2 = jnp.transpose(w2, (0, 2, 3, 1)).reshape(Cout, 9 * cin_pad).astype(jnp.bfloat16)
    b2 = conv_b.astype(jnp.float32).reshape(Cout, 1)

    # Column-validity masks (the only masking the flat layout needs), computed once.
    col = jnp.arange(HW, dtype=jnp.int32) % W
    cmask = jnp.stack([(col >= 1), (col <= W - 2)], axis=0).astype(jnp.float32)  # [2, HW]

    kernel = functools.partial(_blurpool_conv_kernel, width=W, b_blk=b_blk,
                               cin_pad=cin_pad)
    out_flat = pl.pallas_call(
        kernel,
        out_shape=jax.ShapeDtypeStruct((N, Cout, HW), jnp.float32),
        grid_spec=pltpu.PrefetchScalarGridSpec(
            num_scalar_prefetch=0,
            grid=(N // b_blk,),
            in_specs=[
                pl.BlockSpec((b_blk * cin_pad, HW), lambda n: (n, 0)),   # x rows (b, c)
                pl.BlockSpec((Cout, 9 * cin_pad), lambda n: (0, 0)),     # conv weight
                pl.BlockSpec((Cout, 1), lambda n: (0, 0)),               # conv bias
                pl.BlockSpec((2, HW), lambda n: (0, 0)),                 # column masks
            ],
            out_specs=pl.BlockSpec((b_blk, Cout, HW), lambda n: (n, 0, 0)),
            scratch_shapes=[
                pltpu.VMEM((b_blk * cin_pad, HW + 2 * (W + 1)), jnp.float32),  # staging
                pltpu.VMEM((9 * cin_pad, b_blk * HW), jnp.bfloat16),           # MXU RHS
            ],
        ),
        compiler_params=pltpu.CompilerParams(
            dimension_semantics=("parallel",),              # both TensorCores on v7x
        ),
    )(xf, w2, b2, cmask)
    return out_flat.reshape(N, Cout, H, W)


if __name__ == "__main__":
    key = jax.random.PRNGKey(0)
    kx_, kw_, kb_ = jax.random.split(key, 3)

    # wrapped conv assumed: nn.Conv2d(4, 8, kernel_size=3, stride=1, padding=1, bias=True)
    N, Cin, Cout, H, W = 2, 4, 8, 16, 16
    x = jax.random.normal(kx_, (N, Cin, H, W), dtype=jnp.float32)

    fan_in = Cin * 3 * 3
    bound = 1.0 / (fan_in ** 0.5)
    conv_w = jax.random.uniform(kw_, (Cout, Cin, 3, 3), jnp.float32, -bound, bound)
    conv_b = jax.random.uniform(kb_, (Cout,), jnp.float32, -bound, bound)

    out = jax.block_until_ready(blurpool_conv2d(x, conv_w, conv_b))
    assert out.shape == (N, Cout, H, W)

    # pure-JAX reference of the PyTorch forward
    blur_f = jnp.array([[1., 2., 1.], [2., 4., 2.], [1., 2., 1.]], jnp.float32) / 16.0
    blur_w = jnp.tile(blur_f[None, None], (Cin, 1, 1, 1))              # [Cin, 1, 3, 3]
    blurred = lax.conv_general_dilated(
        x, blur_w, window_strides=(1, 1), padding=((1, 1), (1, 1)),
        dimension_numbers=("NCHW", "OIHW", "NCHW"), feature_group_count=Cin,
        precision=lax.Precision.HIGHEST)
    ref = lax.conv_general_dilated(
        blurred, conv_w, window_strides=(1, 1), padding=((1, 1), (1, 1)),
        dimension_numbers=("NCHW", "OIHW", "NCHW"),
        precision=lax.Precision.HIGHEST) + conv_b[None, :, None, None]

    err = float(jnp.max(jnp.abs(out - ref)))
    # Conv matmul runs in bf16 on the MXU (f32 accumulate); blur stays f32.
    assert jnp.allclose(out, ref, atol=5e-3, rtol=5e-3), f"max abs err = {err}"

    print("KERNEL_OK")
</pallas_src>

<mosaic_0001>
module attributes {stable_mosaic.version = 11 : i64} {
  func.func @_blurpool_conv_kernel(%arg0: i32, %arg1: memref<16x256xf32, #tpu.memory_space<vmem>>, %arg2: memref<8x72xbf16, #tpu.memory_space<vmem>>, %arg3: memref<8x1xf32, #tpu.memory_space<vmem>>, %arg4: memref<2x256xf32, #tpu.memory_space<vmem>>, %arg5: memref<2x8x256xf32, #tpu.memory_space<vmem>>, %arg6: memref<16x290xf32, #tpu.memory_space<vmem>>, %arg7: memref<72x512xbf16, #tpu.memory_space<vmem>>) attributes {dimension_semantics = [#tpu.dimension_semantics<parallel>], iteration_bounds = array<i64: 1>, scalar_prefetch = 0 : i64, scratch_operands = 2 : i64, tpu.core_type = #tpu.core_type<tc>, window_params = [{transform_indices = @transform_0, window_bounds = array<i64: 16, 256>}, {pipeline_mode = #tpu.pipeline_mode<synchronous>, transform_indices = @transform_1, window_bounds = array<i64: 8, 72>}, {pipeline_mode = #tpu.pipeline_mode<synchronous>, transform_indices = @transform_2, window_bounds = array<i64: 8, 1>}, {pipeline_mode = #tpu.pipeline_mode<synchronous>, transform_indices = @transform_3, window_bounds = array<i64: 2, 256>}, {transform_indices = @transform_4, window_bounds = array<i64: 2, 8, 256>}]} {
    %c0 = arith.constant 0 : index
    %c0_0 = arith.constant 0 : index
    %0 = vector.load %arg4[%c0, %c0_0] : memref<2x256xf32, #tpu.memory_space<vmem>>, vector<1x256xf32>
    %c1 = arith.constant 1 : index
    %c0_1 = arith.constant 0 : index
    %1 = vector.load %arg4[%c1, %c0_1] : memref<2x256xf32, #tpu.memory_space<vmem>>, vector<1x256xf32>
    %cst = arith.constant 0.000000e+00 : f32
    %2 = vector.broadcast %cst : f32 to vector<16x17xf32>
    %c0_2 = arith.constant 0 : index
    %c0_3 = arith.constant 0 : index
    %3 = vector.load %arg6[%c0_2, %c0_3] : memref<16x290xf32, #tpu.memory_space<vmem>>, vector<16x17xf32>
    tpu.vector_store %arg6[%c0_2, %c0_3], %2 {strides = array<i32>} : memref<16x290xf32, #tpu.memory_space<vmem>>, vector<16x17xf32>,
    %cst_4 = arith.constant 0.000000e+00 : f32
    %4 = vector.broadcast %cst_4 : f32 to vector<16x17xf32>
    %c0_5 = arith.constant 0 : index
    %c273 = arith.constant 273 : index
    %5 = vector.load %arg6[%c0_5, %c273] : memref<16x290xf32, #tpu.memory_space<vmem>>, vector<16x17xf32>
    tpu.vector_store %arg6[%c0_5, %c273], %4 {strides = array<i32>} : memref<16x290xf32, #tpu.memory_space<vmem>>, vector<16x17xf32>,
    %c0_6 = arith.constant 0 : index
    %c0_7 = arith.constant 0 : index
    %6 = vector.load %arg1[%c0_6, %c0_7] : memref<16x256xf32, #tpu.memory_space<vmem>>, vector<16x256xf32>
    %c0_8 = arith.constant 0 : index
    %c17 = arith.constant 17 : index
    %7 = vector.load %arg6[%c0_8, %c17] : memref<16x290xf32, #tpu.memory_space<vmem>>, vector<16x256xf32>
    tpu.vector_store %arg6[%c0_8, %c17], %6 {strides = array<i32>} : memref<16x290xf32, #tpu.memory_space<vmem>>, vector<16x256xf32>,
    %c0_9 = arith.constant 0 : index
    %c1_10 = arith.constant 1 : index
    %8 = vector.load %arg6[%c0_9, %c1_10] : memref<16x290xf32, #tpu.memory_space<vmem>>, vector<16x256xf32>
    %cst_11 = arith.constant 2.000000e+00 : f32
    %9 = vector.broadcast %cst_11 : f32 to vector<16x256xf32>
    %10 = arith.mulf %9, %6 : vector<16x256xf32>
    %11 = arith.addf %8, %10 : vector<16x256xf32>
    %c0_12 = arith.constant 0 : index
    %c33 = arith.constant 33 : index
    %12 = vector.load %arg6[%c0_12, %c33] : memref<16x290xf32, #tpu.memory_space<vmem>>, vector<16x256xf32>
    %13 = arith.addf %11, %12 : vector<16x256xf32>
    %c0_13 = arith.constant 0 : index
    %c17_14 = arith.constant 17 : index
    %14 = vector.load %arg6[%c0_13, %c17_14] : memref<16x290xf32, #tpu.memory_space<vmem>>, vector<16x256xf32>
    tpu.vector_store %arg6[%c0_13, %c17_14], %13 {strides = array<i32>} : memref<16x290xf32, #tpu.memory_space<vmem>>, vector<16x256xf32>,
    %c0_15 = arith.constant 0 : index
    %c16 = arith.constant 16 : index
    %15 = vector.load %arg6[%c0_15, %c16] : memref<16x290xf32, #tpu.memory_space<vmem>>, vector<16x256xf32>
    %16 = vector.broadcast %0 : vector<1x256xf32> to vector<16x256xf32>
    %17 = arith.mulf %15, %16 : vector<16x256xf32>
    %cst_16 = arith.constant 2.000000e+00 : f32
    %18 = vector.broadcast %cst_16 : f32 to vector<16x256xf32>
    %19 = arith.mulf %18, %13 : vector<16x256xf32>
    %20 = arith.addf %17, %19 : vector<16x256xf32>
    %c0_17 = arith.constant 0 : index
    %c18 = arith.constant 18 : index
    %21 = vector.load %arg6[%c0_17, %c18] : memref<16x290xf32, #tpu.memory_space<vmem>>, vector<16x256xf32>
    %22 = vector.broadcast %1 : vector<1x256xf32> to vector<16x256xf32>
    %23 = arith.mulf %21, %22 : vector<16x256xf32>
    %24 = arith.addf %20, %23 : vector<16x256xf32>
    %cst_18 = arith.constant 6.250000e-02 : f32
    %25 = vector.broadcast %cst_18 : f32 to vector<16x256xf32>
    %26 = arith.mulf %24, %25 : vector<16x256xf32>
    %c0_19 = arith.constant 0 : index
    %c17_20 = arith.constant 17 : index
    %27 = vector.load %arg6[%c0_19, %c17_20] : memref<16x290xf32, #tpu.memory_space<vmem>>, vector<16x256xf32>
    tpu.vector_store %arg6[%c0_19, %c17_20], %26 {strides = array<i32>} : memref<16x290xf32, #tpu.memory_space<vmem>>, vector<16x256xf32>,
    %c0_21 = arith.constant 0 : index
    %c0_22 = arith.constant 0 : index
    %28 = vector.load %arg6[%c0_21, %c0_22] : memref<16x290xf32, #tpu.memory_space<vmem>>, vector<8x256xf32>
    %29 = vector.broadcast %0 : vector<1x256xf32> to vector<8x256xf32>
    %30 = arith.mulf %28, %29 : vector<8x256xf32>
    %c0_23 = arith.constant 0 : index
    %c1_24 = arith.constant 1 : index
    %31 = vector.load %arg6[%c0_23, %c1_24] : memref<16x290xf32, #tpu.memory_space<vmem>>, vector<8x256xf32>
    %c0_25 = arith.constant 0 : index
    %c2 = arith.constant 2 : index
    %32 = vector.load %arg6[%c0_25, %c2] : memref<16x290xf32, #tpu.memory_space<vmem>>, vector<8x256xf32>
    %33 = vector.broadcast %1 : vector<1x256xf32> to vector<8x256xf32>
    %34 = arith.mulf %32, %33 : vector<8x256xf32>
    %c0_26 = arith.constant 0 : index
    %c16_27 = arith.constant 16 : index
    %35 = vector.load %arg6[%c0_26, %c16_27] : memref<16x290xf32, #tpu.memory_space<vmem>>, vector<8x256xf32>
    %36 = vector.broadcast %0 : vector<1x256xf32> to vector<8x256xf32>
    %37 = arith.mulf %35, %36 : vector<8x256xf32>
    %c0_28 = arith.constant 0 : index
    %c17_29 = arith.constant 17 : index
    %38 = vector.load %arg6[%c0_28, %c17_29] : memref<16x290xf32, #tpu.memory_space<vmem>>, vector<8x256xf32>
    %c0_30 = arith.constant 0 : index
    %c18_31 = arith.constant 18 : index
    %39 = vector.load %arg6[%c0_30, %c18_31] : memref<16x290xf32, #tpu.memory_space<vmem>>, vector<8x256xf32>
    %40 = vector.broadcast %1 : vector<1x256xf32> to vector<8x256xf32>
    %41 = arith.mulf %39, %40 : vector<8x256xf32>
    %c0_32 = arith.constant 0 : index
    %c32 = arith.constant 32 : index
    %42 = vector.load %arg6[%c0_32, %c32] : memref<16x290xf32, #tpu.memory_space<vmem>>, vector<8x256xf32>
    %43 = vector.broadcast %0 : vector<1x256xf32> to vector<8x256xf32>
    %44 = arith.mulf %42, %43 : vector<8x256xf32>
    %c0_33 = arith.constant 0 : index
    %c33_34 = arith.constant 33 : index
    %45 = vector.load %arg6[%c0_33, %c33_34] : memref<16x290xf32, #tpu.memory_space<vmem>>, vector<8x256xf32>
    %c0_35 = arith.constant 0 : index
    %c34 = arith.constant 34 : index
    %46 = vector.load %arg6[%c0_35, %c34] : memref<16x290xf32, #tpu.memory_space<vmem>>, vector<8x256xf32>
    %47 = vector.broadcast %1 : vector<1x256xf32> to vector<8x256xf32>
    %48 = arith.mulf %46, %47 : vector<8x256xf32>
    %49 = tpu.concatenate %30, %31, %34, %37, %38, %41, %44, %45, %48 in 0 : vector<8x256xf32>, vector<8x256xf32>, vector<8x256xf32>, vector<8x256xf32>, vector<8x256xf32>, vector<8x256xf32>, vector<8x256xf32>, vector<8x256xf32>, vector<8x256xf32> -> vector<72x256xf32>
    %50 = arith.truncf %49 : vector<72x256xf32> to vector<72x256xbf16>
    %c0_36 = arith.constant 0 : index
    %c0_37 = arith.constant 0 : index
    %51 = vector.load %arg7[%c0_36, %c0_37] : memref<72x512xbf16, #tpu.memory_space<vmem>>, vector<72x256xbf16>
    tpu.vector_store %arg7[%c0_36, %c0_37], %50 {strides = array<i32>} : memref<72x512xbf16, #tpu.memory_space<vmem>>, vector<72x256xbf16>,
    %c8 = arith.constant 8 : index
    %c0_38 = arith.constant 0 : index
    %52 = vector.load %arg6[%c8, %c0_38] : memref<16x290xf32, #tpu.memory_space<vmem>>, vector<8x256xf32>
    %53 = vector.broadcast %0 : vector<1x256xf32> to vector<8x256xf32>
    %54 = arith.mulf %52, %53 : vector<8x256xf32>
    %c8_39 = arith.constant 8 : index
    %c1_40 = arith.constant 1 : index
    %55 = vector.load %arg6[%c8_39, %c1_40] : memref<16x290xf32, #tpu.memory_space<vmem>>, vector<8x256xf32>
    %c8_41 = arith.constant 8 : index
    %c2_42 = arith.constant 2 : index
    %56 = vector.load %arg6[%c8_41, %c2_42] : memref<16x290xf32, #tpu.memory_space<vmem>>, vector<8x256xf32>
    %57 = vector.broadcast %1 : vector<1x256xf32> to vector<8x256xf32>
    %58 = arith.mulf %56, %57 : vector<8x256xf32>
    %c8_43 = arith.constant 8 : index
    %c16_44 = arith.constant 16 : index
    %59 = vector.load %arg6[%c8_43, %c16_44] : memref<16x290xf32, #tpu.memory_space<vmem>>, vector<8x256xf32>
    %60 = vector.broadcast %0 : vector<1x256xf32> to vector<8x256xf32>
    %61 = arith.mulf %59, %60 : vector<8x256xf32>
    %c8_45 = arith.constant 8 : index
    %c17_46 = arith.constant 17 : index
    %62 = vector.load %arg6[%c8_45, %c17_46] : memref<16x290xf32, #tpu.memory_space<vmem>>, vector<8x256xf32>
    %c8_47 = arith.constant 8 : index
    %c18_48 = arith.constant 18 : index
    %63 = vector.load %arg6[%c8_47, %c18_48] : memref<16x290xf32, #tpu.memory_space<vmem>>, vector<8x256xf32>
    %64 = vector.broadcast %1 : vector<1x256xf32> to vector<8x256xf32>
    %65 = arith.mulf %63, %64 : vector<8x256xf32>
    %c8_49 = arith.constant 8 : index
    %c32_50 = arith.constant 32 : index
    %66 = vector.load %arg6[%c8_49, %c32_50] : memref<16x290xf32, #tpu.memory_space<vmem>>, vector<8x256xf32>
    %67 = vector.broadcast %0 : vector<1x256xf32> to vector<8x256xf32>
    %68 = arith.mulf %66, %67 : vector<8x256xf32>
    %c8_51 = arith.constant 8 : index
    %c33_52 = arith.constant 33 : index
    %69 = vector.load %arg6[%c8_51, %c33_52] : memref<16x290xf32, #tpu.memory_space<vmem>>, vector<8x256xf32>
    %c8_53 = arith.constant 8 : index
    %c34_54 = arith.constant 34 : index
    %70 = vector.load %arg6[%c8_53, %c34_54] : memref<16x290xf32, #tpu.memory_space<vmem>>, vector<8x256xf32>
    %71 = vector.broadcast %1 : vector<1x256xf32> to vector<8x256xf32>
    %72 = arith.mulf %70, %71 : vector<8x256xf32>
    %73 = tpu.concatenate %54, %55, %58, %61, %62, %65, %68, %69, %72 in 0 : vector<8x256xf32>, vector<8x256xf32>, vector<8x256xf32>, vector<8x256xf32>, vector<8x256xf32>, vector<8x256xf32>, vector<8x256xf32>, vector<8x256xf32>, vector<8x256xf32> -> vector<72x256xf32>
    %74 = arith.truncf %73 : vector<72x256xf32> to vector<72x256xbf16>
    %c0_55 = arith.constant 0 : index
    %c256 = arith.constant 256 : index
    %75 = vector.load %arg7[%c0_55, %c256] : memref<72x512xbf16, #tpu.memory_space<vmem>>, vector<72x256xbf16>
    tpu.vector_store %arg7[%c0_55, %c256], %74 {strides = array<i32>} : memref<72x512xbf16, #tpu.memory_space<vmem>>, vector<72x256xbf16>,
    %c0_56 = arith.constant 0 : index
    %c0_57 = arith.constant 0 : index
    %76 = vector.load %arg2[%c0_56, %c0_57] : memref<8x72xbf16, #tpu.memory_space<vmem>>, vector<8x72xbf16>
    %c0_58 = arith.constant 0 : index
    %c0_59 = arith.constant 0 : index
    %77 = vector.load %arg7[%c0_58, %c0_59] : memref<72x512xbf16, #tpu.memory_space<vmem>>, vector<72x512xbf16>
    %cst_60 = arith.constant dense<0.000000e+00> : vector<8x512xf32>
    %78 = tpu.matmul %76, %77, %cst_60 {dimension_numbers = #tpu.dot_dimension_numbers<[1], [0], [0], [1], [0, 0, 1, 1], [], []>} : vector<8x72xbf16>, vector<72x512xbf16>, vector<8x512xf32> -> vector<8x512xf32>
    %c0_61 = arith.constant 0 : index
    %c0_62 = arith.constant 0 : index
    %79 = vector.load %arg3[%c0_61, %c0_62] : memref<8x1xf32, #tpu.memory_space<vmem>>, vector<8x1xf32>
    %80 = vector.extract_strided_slice %78 {offsets = [0, 0], sizes = [8, 256], strides = [1, 1]} : vector<8x512xf32> to vector<8x256xf32>
    %81 = vector.broadcast %79 : vector<8x1xf32> to vector<8x256xf32>
    %82 = arith.addf %80, %81 : vector<8x256xf32>
    %c0_63 = arith.constant 0 : index
    %c0_64 = arith.constant 0 : index
    %c0_65 = arith.constant 0 : index
    %83 = vector.load %arg5[%c0_63, %c0_64, %c0_65] : memref<2x8x256xf32, #tpu.memory_space<vmem>>, vector<1x8x256xf32>
    %84 = vector.shape_cast %83 : vector<1x8x256xf32> to vector<8x256xf32>
    %85 = vector.shape_cast %82 : vector<8x256xf32> to vector<1x8x256xf32>
    tpu.vector_store %arg5[%c0_63, %c0_64, %c0_65], %85 {strides = array<i32>} : memref<2x8x256xf32, #tpu.memory_space<vmem>>, vector<1x8x256xf32>,
    %86 = vector.extract_strided_slice %78 {offsets = [0, 256], sizes = [8, 256], strides = [1, 1]} : vector<8x512xf32> to vector<8x256xf32>
    %87 = vector.broadcast %79 : vector<8x1xf32> to vector<8x256xf32>
    %88 = arith.addf %86, %87 : vector<8x256xf32>
    %c1_66 = arith.constant 1 : index
    %c0_67 = arith.constant 0 : index
    %c0_68 = arith.constant 0 : index
    %89 = vector.load %arg5[%c1_66, %c0_67, %c0_68] : memref<2x8x256xf32, #tpu.memory_space<vmem>>, vector<1x8x256xf32>
    %90 = vector.shape_cast %89 : vector<1x8x256xf32> to vector<8x256xf32>
    %91 = vector.shape_cast %88 : vector<8x256xf32> to vector<1x8x256xf32>
    tpu.vector_store %arg5[%c1_66, %c0_67, %c0_68], %91 {strides = array<i32>} : memref<2x8x256xf32, #tpu.memory_space<vmem>>, vector<1x8x256xf32>,
    return
  }
  func.func @transform_0(%arg0: i32) -> (i32, i32) {
    %c0_i32 = arith.constant 0 : i32
    %c0_i32_0 = arith.constant 0 : i32
    return %arg0, %c0_i32 : i32, i32
  }
  func.func @transform_1(%arg0: i32) -> (i32, i32) {
    %c0_i32 = arith.constant 0 : i32
    %c0_i32_0 = arith.constant 0 : i32
    %c0_i32_1 = arith.constant 0 : i32
    return %c0_i32, %c0_i32_0 : i32, i32
  }
  func.func @transform_2(%arg0: i32) -> (i32, i32) {
    %c0_i32 = arith.constant 0 : i32
    %c0_i32_0 = arith.constant 0 : i32
    %c0_i32_1 = arith.constant 0 : i32
    return %c0_i32, %c0_i32_0 : i32, i32
  }
  func.func @transform_3(%arg0: i32) -> (i32, i32) {
    %c0_i32 = arith.constant 0 : i32
    %c0_i32_0 = arith.constant 0 : i32
    %c0_i32_1 = arith.constant 0 : i32
    return %c0_i32, %c0_i32_0 : i32, i32
  }
  func.func @transform_4(%arg0: i32) -> (i32, i32, i32) {
    %c0_i32 = arith.constant 0 : i32
    %c0_i32_0 = arith.constant 0 : i32
    %c0_i32_1 = arith.constant 0 : i32
    return %arg0, %c0_i32, %c0_i32_0 : i32, i32, i32
  }
}

</mosaic_0001>

<llo_original>
// kernel: tpu_custom_call.1
$region0: #{tpu_custom_call.1}
  #allocation0 [shape = 'u32[]', space=smem, size = 0x4, offset = 0x4, fixed_abs, tag = 'smem constant byte address 0x4 - core index']
  #allocation1 [shape = 'u32[144,128]{1,0:T(1,128)}', space=vmem, size = 0x12000, scoped, tag = 'internal scratch']
  #allocation2 [shape = 'f32[16,290]{1,0:T(8,128)}', space=vmem, size = 0x6000, scoped, tag = 'scratch operand']
  #allocation3 [shape = 'bf16[72,512]{1,0:T(8,128)(2,1)}', space=vmem, size = 0x12000, scoped, tag = 'scratch operand']
  %s0 = inlined_call_operand.hbm [shape: f32[16,256], index: 0, kind: input, shape index: {}]
  %s1 = inlined_call_operand.vmem [shape: bf16[8,72], index: 1, kind: input, shape index: {}]
  %s2 = inlined_call_operand.vmem [shape: f32[8,1], index: 2, kind: input, shape index: {}]
  %s3 = inlined_call_operand.vmem [shape: f32[2,256], index: 3, kind: input, shape index: {}]
  %s4 = inlined_call_operand.hbm [shape: f32[2,8,256], index: 4, kind: output, shape index: {}]
  %s5 = sld [smem:[#allocation0]]
  $region30: #{tpu_custom_call.1} parent=0
    _
  %s7 = ssub.s32 1, %s5
  %s8 = scalar_select 0, %s7, %s5
  $region1: #{tpu_custom_call.1} parent=0
    #allocation4 [shape = 'u8[16384]{0}', space=vmem, size = 0x4000, scoped, tag = 'input window, operand 0, single buffered']
    #allocation5 [shape = 's32[1]{0}', space=sflag, size = 0x4, scoped, tag = 'scoped memory for tpu_custom_call.1']
    #allocation6 [shape = 's32[1]{0}', space=sflag, size = 0x4, scoped, tag = 'scoped memory for tpu_custom_call.1']
    #allocation7 [shape = 'u8[16384]{0}', space=vmem, size = 0x4000, scoped, tag = 'output window, operand 0, single buffered']
    %9 = vsyncpa [#allocation5], 0
    %10 = vsyncpa [#allocation6], 0
    // Predicated region
    $region2: #{tpu_custom_call.1} parent=1 // pred_check
      _
    $region3: #{tpu_custom_call.1} parent=1 // pred_check_branch
      %12 = sbr.rel (0) target = $region5
    $region4: #{tpu_custom_call.1} parent=1 // pred_region
      %s14 = ssub.s32 512, 512
      %15 = vsyncadd [#allocation5], %s14
      %s16 = sshll.u32 [#allocation4], 4
      %s17 = int_to_ptr.vmem [resolvable:$true] %s16
      %22 = dma.hbm_to_vmem [thread:$0]  %s0, 512, %s17, [#allocation5], 256, 256, 16
    $region5: #{tpu_custom_call.1} parent=1 // pred_fallthru
      _
    // Predicated region
    $region6: #{tpu_custom_call.1} parent=1 // pred_check
      _
    $region7: #{tpu_custom_call.1} parent=1 // pred_check_branch
      %24 = sbr.rel (0) target = $region9
    $region8: #{tpu_custom_call.1} parent=1 // pred_region
      _
    $region9: #{tpu_custom_call.1} parent=1 // pred_fallthru
      _
    // Predicated region
    $region10: #{tpu_custom_call.1} parent=1 // pred_check
      _
    $region11: #{tpu_custom_call.1} parent=1 // pred_check_branch
      %26 = sbr.rel (0) target = $region13
    $region12: #{tpu_custom_call.1} parent=1 // pred_region
      _
    $region13: #{tpu_custom_call.1} parent=1 // pred_fallthru
      _
    // Predicated region
    $region14: #{tpu_custom_call.1} parent=1 // pred_check
      _
    $region15: #{tpu_custom_call.1} parent=1 // pred_check_branch
      %28 = sbr.rel (0) target = $region17
    $region16: #{tpu_custom_call.1} parent=1 // pred_region
      _
    $region17: #{tpu_custom_call.1} parent=1 // pred_fallthru
      _
    // Predicated region
    $region18: #{tpu_custom_call.1} parent=1 // pred_check
      _
    $region19: #{tpu_custom_call.1} parent=1 // pred_check_branch
      %30 = sbr.rel (0) target = $region21
    $region20: #{tpu_custom_call.1} parent=1 // pred_region
      %31 = dma.done [#allocation5], 512
    $region21: #{tpu_custom_call.1} parent=1 // pred_fallthru
      _
    %v33 = vld [vmem:[%s3] ss:$2 sm:$0x3]
    %s34 = scalar_lea.vmem %s3, 1
    %v35 = vld [vmem:[%s34] ss:$2 sm:$0x3]
    %vm36 = vcmask 138240
    %37 = vst.msk [vmem:[#allocation2] sm:$0xff] %vm36, 0.0
    %38 = vst.msk [vmem:[#allocation2 + $0x18] sm:$0xff] %vm36, 0.0
    %vm39 = vcmask 277640
    %40 = vst.msk [vmem:[#allocation2 + $0x10] sm:$0xff] %vm39, 0.0
    %41 = vst.msk [vmem:[#allocation2 + $0x28] sm:$0xff] %vm39, 0.0
    %v42 = vld [vmem:[#allocation4] sm:$0xff]
    %v43 = vld [vmem:[#allocation4 + $0x8] sm:$0xff]
    %v44 = vld [vmem:[#allocation4 + $0x10] sm:$0xff]
    %v45 = vld [vmem:[#allocation4 + $0x18] sm:$0xff]
    %50 = vrot.lane.b32.xlu0 %v42, 17
    %v51 = vpop.permute.xlu0 %50
    %52 = vrot.lane.b32.xlu0 %v43, 17
    %v53 = vpop.permute.xlu0 %52
    %54 = vrot.lane.b32.xlu0 %v44, 17
    %v55 = vpop.permute.xlu0 %54
    %56 = vrot.lane.b32.xlu0 %v45, 17
    %v57 = vpop.permute.xlu0 %56
    %v58 = vsel %vm36, %v51, %v53
    %v59 = vsel %vm36, %v55, %v57
    %vm66 = vcmask 1047688
    %67 = vst.msk [vmem:[#allocation2] sm:$0xff] %vm66, %v51
    %68 = vst [vmem:[#allocation2 + $0x8] sm:$0xff] %v58
    %69 = vst.msk [vmem:[#allocation2 + $0x10] sm:$0xff] %vm36, %v53
    %70 = vst.msk [vmem:[#allocation2 + $0x18] sm:$0xff] %vm66, %v55
    %71 = vst [vmem:[#allocation2 + $0x20] sm:$0xff] %v59
    %72 = vst.msk [vmem:[#allocation2 + $0x28] sm:$0xff] %vm36, %v57
    %v73 = vld [vmem:[#allocation2] sm:$0xff]
    %v74 = vld [vmem:[#allocation2 + $0x8] sm:$0xff]
    %v75 = vld [vmem:[#allocation2 + $0x10] sm:$0xff]
    %v76 = vld [vmem:[#allocation2 + $0x18] sm:$0xff]
    %v77 = vld [vmem:[#allocation2 + $0x20] sm:$0xff]
    %v78 = vld [vmem:[#allocation2 + $0x28] sm:$0xff]
    %v79 = vmul.f32 %v42, 2.0
    %v80 = vmul.f32 %v43, 2.0
    %v81 = vmul.f32 %v44, 2.0
    %v82 = vmul.f32 %v45, 2.0
    %87 = vrot.lane.b32.xlu0 %v79, 1
    %v88 = vpop.permute.xlu0 %87
    %89 = vrot.lane.b32.xlu0 %v80, 1
    %v90 = vpop.permute.xlu0 %89
    %91 = vrot.lane.b32.xlu0 %v81, 1
    %v92 = vpop.permute.xlu0 %91
    %93 = vrot.lane.b32.xlu0 %v82, 1
    %v94 = vpop.permute.xlu0 %93
    %vm95 = vcmask 7168
    %v96 = vsel %vm95, %v88, %v90
    %v97 = vsel %vm95, %v92, %v94
    %v104 = vadd.f32 %v73, %v88
    %v105 = vadd.f32 %v74, %v96
    %v106 = vadd.f32 %v75, %v90
    %v107 = vadd.f32 %v76, %v92
    %v108 = vadd.f32 %v77, %v97
    %v109 = vadd.f32 %v78, %v94
    %116 = vrot.lane.b32.xlu0 %v73, 96
    %v117 = vpop.permute.xlu0 %116
    %118 = vrot.lane.b32.xlu0 %v74, 96
    %v119 = vpop.permute.xlu0 %118
    %120 = vrot.lane.b32.xlu0 %v75, 96
    %v121 = vpop.permute.xlu0 %120
    %122 = vrot.lane.b32.xlu0 %v76, 96
    %v123 = vpop.permute.xlu0 %122
    %124 = vrot.lane.b32.xlu0 %v77, 96
    %v125 = vpop.permute.xlu0 %124
    %126 = vrot.lane.b32.xlu0 %v78, 96
    %v127 = vpop.permute.xlu0 %126
    %vm128 = vcmask 785408
    %v129 = vsel %vm128, %v117, %v119
    %v130 = vsel %vm128, %v119, %v121
    %v131 = vsel %vm128, %v123, %v125
    %v132 = vsel %vm128, %v125, %v127
    %v139 = vadd.f32 %v104, %v129
    %v140 = vadd.f32 %v105, %v130
    %v141 = vadd.f32 %v106, %v121
    %v142 = vadd.f32 %v107, %v131
    %v143 = vadd.f32 %v108, %v132
    %v144 = vadd.f32 %v109, %v127
    %151 = vrot.lane.b32.xlu0 %v139, 16
    %v152 = vpop.permute.xlu0 %151
    %153 = vrot.lane.b32.xlu0 %v140, 16
    %v154 = vpop.permute.xlu0 %153
    %155 = vrot.lane.b32.xlu0 %v141, 16
    %v156 = vpop.permute.xlu0 %155
    %157 = vrot.lane.b32.xlu0 %v142, 16
    %v158 = vpop.permute.xlu0 %157
    %159 = vrot.lane.b32.xlu0 %v143, 16
    %v160 = vpop.permute.xlu0 %159
    %161 = vrot.lane.b32.xlu0 %v144, 16
    %v162 = vpop.permute.xlu0 %161
    %vm163 = vcmask 130048
    %v164 = vsel %vm163, %v152, %v154
    %v165 = vsel %vm163, %v154, %v156
    %v166 = vsel %vm163, %v158, %v160
    %v167 = vsel %vm163, %v160, %v162
    %174 = vst.msk [vmem:[#allocation2] sm:$0xff] %vm66, %v152
    %175 = vst [vmem:[#allocation2 + $0x8] sm:$0xff] %v164
    %176 = vst.msk [vmem:[#allocation2 + $0x10] sm:$0xff] %vm36, %v165
    %177 = vst.msk [vmem:[#allocation2 + $0x18] sm:$0xff] %vm66, %v158
    %178 = vst [vmem:[#allocation2 + $0x20] sm:$0xff] %v166
    %179 = vst.msk [vmem:[#allocation2 + $0x28] sm:$0xff] %vm36, %v167
    %v180 = vld [vmem:[#allocation2] sm:$0xff]
    %v181 = vld [vmem:[#allocation2 + $0x8] sm:$0xff]
    %v182 = vld [vmem:[#allocation2 + $0x10] sm:$0xff]
    %v183 = vld [vmem:[#allocation2 + $0x18] sm:$0xff]
    %v184 = vld [vmem:[#allocation2 + $0x20] sm:$0xff]
    %v185 = vld [vmem:[#allocation2 + $0x28] sm:$0xff]
    %v187 = vlaneseq
    %v188 = vshrl.u32 %v187, 7
    %v189 = vsub.s32 0, %v188
    %v190 = vrot.slane %v33, %v189
    %v191 = vlaneseq
    %v192 = vshrl.u32 %v191, 7
    %v193 = vsub.s32 1, %v192
    %v194 = vrot.slane %v33, %v193
    %195 = vrot.lane.b32.xlu0 %v190, 16
    %v196 = vpop.permute.xlu0 %195
    %197 = vrot.lane.b32.xlu0 %v194, 16
    %v198 = vpop.permute.xlu0 %197
    %v199 = vsel %vm163, %v196, %v198
    %v203 = vmul.f32 %v180, %v196
    %v204 = vmul.f32 %v181, %v199
    %v205 = vmul.f32 %v182, %v198
    %v206 = vmul.f32 %v183, %v196
    %v207 = vmul.f32 %v184, %v199
    %v208 = vmul.f32 %v185, %v198
    %v209 = vmul.f32 %v139, 2.0
    %v210 = vmul.f32 %v140, 2.0
    %v211 = vmul.f32 %v141, 2.0
    %v212 = vmul.f32 %v142, 2.0
    %v213 = vmul.f32 %v143, 2.0
    %v214 = vmul.f32 %v144, 2.0
    %221 = vrot.lane.b32.xlu0 %v209, 15
    %v222 = vpop.permute.xlu0 %221
    %223 = vrot.lane.b32.xlu0 %v210, 15
    %v224 = vpop.permute.xlu0 %223
    %225 = vrot.lane.b32.xlu0 %v211, 15
    %v226 = vpop.permute.xlu0 %225
    %227 = vrot.lane.b32.xlu0 %v212, 15
    %v228 = vpop.permute.xlu0 %227
    %229 = vrot.lane.b32.xlu0 %v213, 15
    %v230 = vpop.permute.xlu0 %229
    %231 = vrot.lane.b32.xlu0 %v214, 15
    %v232 = vpop.permute.xlu0 %231
    %vm233 = vcmask 121856
    %v234 = vsel %vm233, %v222, %v224
    %v235 = vsel %vm233, %v224, %v226
    %v236 = vsel %vm233, %v228, %v230
    %v237 = vsel %vm233, %v230, %v232
    %v244 = vadd.f32 %v203, %v222
    %v245 = vadd.f32 %v204, %v234
    %v246 = vadd.f32 %v205, %v235
    %v247 = vadd.f32 %v206, %v228
    %v248 = vadd.f32 %v207, %v236
    %v249 = vadd.f32 %v208, %v237
    %v251 = vlaneseq
    %v252 = vshrl.u32 %v251, 7
    %v253 = vsub.s32 0, %v252
    %v254 = vrot.slane %v35, %v253
    %v255 = vlaneseq
    %v256 = vshrl.u32 %v255, 7
    %v257 = vsub.s32 1, %v256
    %v258 = vrot.slane %v35, %v257
    %259 = vrot.lane.b32.xlu0 %v254, 18
    %v260 = vpop.permute.xlu0 %259
    %261 = vrot.lane.b32.xlu0 %v258, 18
    %v262 = vpop.permute.xlu0 %261
    %vm263 = vcmask 146432
    %v264 = vsel %vm263, %v260, %v262
    %v268 = vmul.f32 %v180, %v260
    %v269 = vmul.f32 %v181, %v264
    %v270 = vmul.f32 %v182, %v262
    %v271 = vmul.f32 %v183, %v260
    %v272 = vmul.f32 %v184, %v264
    %v273 = vmul.f32 %v185, %v262
    %280 = vrot.lane.b32.xlu0 %v268, 126
    %v281 = vpop.permute.xlu0 %280
    %282 = vrot.lane.b32.xlu0 %v269, 126
    %v283 = vpop.permute.xlu0 %282
    %284 = vrot.lane.b32.xlu0 %v270, 126
    %v285 = vpop.permute.xlu0 %284
    %286 = vrot.lane.b32.xlu0 %v271, 126
    %v287 = vpop.permute.xlu0 %286
    %288 = vrot.lane.b32.xlu0 %v272, 126
    %v289 = vpop.permute.xlu0 %288
    %290 = vrot.lane.b32.xlu0 %v273, 126
    %v291 = vpop.permute.xlu0 %290
    %vm292 = vcmask 1031168
    %v293 = vsel %vm292, %v281, %v283
    %v294 = vsel %vm292, %v283, %v285
    %v295 = vsel %vm292, %v287, %v289
    %v296 = vsel %vm292, %v289, %v291
    %v303 = vadd.f32 %v244, %v293
    %v304 = vadd.f32 %v245, %v294
    %v305 = vadd.f32 %v246, %v285
    %v306 = vadd.f32 %v247, %v295
    %v307 = vadd.f32 %v248, %v296
    %v308 = vadd.f32 %v249, %v291
    %v309 = vmul.f32 %v303, 0.0625
    %v310 = vmul.f32 %v304, 0.0625
    %v311 = vmul.f32 %v305, 0.0625
    %v312 = vmul.f32 %v306, 0.0625
    %v313 = vmul.f32 %v307, 0.0625
    %v314 = vmul.f32 %v308, 0.0625
    %321 = vrot.lane.b32.xlu0 %v309, 1
    %v322 = vpop.permute.xlu0 %321
    %323 = vrot.lane.b32.xlu0 %v310, 1
    %v324 = vpop.permute.xlu0 %323
    %325 = vrot.lane.b32.xlu0 %v311, 1
    %v326 = vpop.permute.xlu0 %325
    %327 = vrot.lane.b32.xlu0 %v312, 1
    %v328 = vpop.permute.xlu0 %327
    %329 = vrot.lane.b32.xlu0 %v313, 1
    %v330 = vpop.permute.xlu0 %329
    %331 = vrot.lane.b32.xlu0 %v314, 1
    %v332 = vpop.permute.xlu0 %331
    %v333 = vsel %vm95, %v322, %v324
    %v334 = vsel %vm95, %v324, %v326
    %v335 = vsel %vm95, %v328, %v330
    %v336 = vsel %vm95, %v330, %v332
    %343 = vst.msk [vmem:[#allocation2] sm:$0xff] %vm66, %v322
    %344 = vst [vmem:[#allocation2 + $0x8] sm:$0xff] %v333
    %345 = vst.msk [vmem:[#allocation2 + $0x10] sm:$0xff] %vm36, %v334
    %346 = vst.msk [vmem:[#allocation2 + $0x18] sm:$0xff] %vm66, %v328
    %347 = vst [vmem:[#allocation2 + $0x20] sm:$0xff] %v335
    %348 = vst.msk [vmem:[#allocation2 + $0x28] sm:$0xff] %vm36, %v336
    %v349 = vld [vmem:[#allocation2] sm:$0xff]
    %v350 = vld [vmem:[#allocation2 + $0x8] sm:$0xff]
    %v353 = vmul.f32 %v349, %v190
    %v354 = vmul.f32 %v350, %v194
    %v355 = vld [vmem:[#allocation2 + $0x10] sm:$0xff]
    %356 = vrot.lane.b32.xlu0 %v254, 2
    %v357 = vpop.permute.xlu0 %356
    %358 = vrot.lane.b32.xlu0 %v258, 2
    %v359 = vpop.permute.xlu0 %358
    %vm360 = vcmask 15360
    %v361 = vsel %vm360, %v357, %v359
    %v365 = vmul.f32 %v349, %v357
    %v366 = vmul.f32 %v350, %v361
    %v367 = vmul.f32 %v355, %v359
    %v368 = vmul.f32 %v349, %v196
    %v369 = vmul.f32 %v350, %v199
    %v370 = vmul.f32 %v355, %v198
    %v371 = vmul.f32 %v349, %v260
    %v372 = vmul.f32 %v350, %v264
    %v373 = vmul.f32 %v355, %v262
    %374 = vrot.lane.b32.xlu0 %v190, 32
    %v375 = vpop.permute.xlu0 %374
    %376 = vrot.lane.b32.xlu0 %v194, 32
    %v377 = vpop.permute.xlu0 %376
    %vm378 = vcmask 261120
    %v379 = vsel %vm378, %v375, %v377
    %v383 = vmul.f32 %v349, %v375
    %v384 = vmul.f32 %v350, %v379
    %v385 = vmul.f32 %v355, %v377
    %386 = vrot.lane.b32.xlu0 %v254, 34
    %v387 = vpop.permute.xlu0 %386
    %388 = vrot.lane.b32.xlu0 %v258, 34
    %v389 = vpop.permute.xlu0 %388
    %vm390 = vcmask 277504
    %v391 = vsel %vm390, %v387, %v389
    %v395 = vmul.f32 %v349, %v387
    %v396 = vmul.f32 %v350, %v391
    %v397 = vmul.f32 %v355, %v389
    %401 = vrot.lane.b32.xlu0 %v349, 127
    %v402 = vpop.permute.xlu0 %401
    %403 = vrot.lane.b32.xlu0 %v350, 127
    %v404 = vpop.permute.xlu0 %403
    %405 = vrot.lane.b32.xlu0 %v355, 127
    %v406 = vpop.permute.xlu0 %405
    %vm407 = vcmask 1039360
    %v408 = vsel %vm407, %v402, %v404
    %v409 = vsel %vm407, %v404, %v406
    %415 = vrot.lane.b32.xlu0 %v365, 126
    %v416 = vpop.permute.xlu0 %415
    %417 = vrot.lane.b32.xlu0 %v366, 126
    %v418 = vpop.permute.xlu0 %417
    %419 = vrot.lane.b32.xlu0 %v367, 126
    %v420 = vpop.permute.xlu0 %419
    %v421 = vsel %vm292, %v416, %v418
    %v422 = vsel %vm292, %v418, %v420
    %428 = vrot.lane.b32.xlu0 %v368, 112
    %v429 = vpop.permute.xlu0 %428
    %430 = vrot.lane.b32.xlu0 %v369, 112
    %v431 = vpop.permute.xlu0 %430
    %432 = vrot.lane.b32.xlu0 %v370, 112
    %v433 = vpop.permute.xlu0 %432
    %vm434 = vcmask 916480
    %v435 = vsel %vm434, %v429, %v431
    %v436 = vsel %vm434, %v431, %v433
    %439 = vrot.lane.b32.xlu0 %v349, 111
    %v440 = vpop.permute.xlu0 %439
    %441 = vrot.lane.b32.xlu0 %v350, 111
    %v442 = vpop.permute.xlu0 %441
    %443 = vrot.lane.b32.xlu0 %v355, 111
    %v444 = vpop.permute.xlu0 %443
    %vm445 = vcmask 908288
    %v446 = vsel %vm445, %v440, %v442
    %v447 = vsel %vm445, %v442, %v444
    %453 = vrot.lane.b32.xlu0 %v371, 110
    %v454 = vpop.permute.xlu0 %453
    %455 = vrot.lane.b32.xlu0 %v372, 110
    %v456 = vpop.permute.xlu0 %455
    %457 = vrot.lane.b32.xlu0 %v373, 110
    %v458 = vpop.permute.xlu0 %457
    %vm459 = vcmask 900096
    %v460 = vsel %vm459, %v454, %v456
    %v461 = vsel %vm459, %v456, %v458
    %467 = vrot.lane.b32.xlu0 %v383, 96
    %v468 = vpop.permute.xlu0 %467
    %469 = vrot.lane.b32.xlu0 %v384, 96
    %v470 = vpop.permute.xlu0 %469
    %471 = vrot.lane.b32.xlu0 %v385, 96
    %v472 = vpop.permute.xlu0 %471
    %v473 = vsel %vm128, %v468, %v470
    %v474 = vsel %vm128, %v470, %v472
    %477 = vrot.lane.b32.xlu0 %v349, 95
    %v478 = vpop.permute.xlu0 %477
    %479 = vrot.lane.b32.xlu0 %v350, 95
    %v480 = vpop.permute.xlu0 %479
    %481 = vrot.lane.b32.xlu0 %v355, 95
    %v482 = vpop.permute.xlu0 %481
    %vm483 = vcmask 777216
    %v484 = vsel %vm483, %v478, %v480
    %v485 = vsel %vm483, %v480, %v482
    %491 = vrot.lane.b32.xlu0 %v395, 94
    %v492 = vpop.permute.xlu0 %491
    %493 = vrot.lane.b32.xlu0 %v396, 94
    %v494 = vpop.permute.xlu0 %493
    %495 = vrot.lane.b32.xlu0 %v397, 94
    %v496 = vpop.permute.xlu0 %495
    %vm497 = vcmask 769024
    %v498 = vsel %vm497, %v492, %v494
    %v499 = vsel %vm497, %v494, %v496
    %v502 = vpack.c.bf16 %v408, %v353
    %v503 = vpack.c.bf16 %v409, %v354
    %v504 = vpack.c.bf16 %v435, %v421
    %v505 = vpack.c.bf16 %v436, %v422
    %v506 = vpack.c.bf16 %v460, %v446
    %v507 = vpack.c.bf16 %v461, %v447
    %v508 = vpack.c.bf16 %v484, %v473
    %v509 = vpack.c.bf16 %v485, %v474
    %v510 = vpack.c.bf16 %v498, %v498
    %v511 = vpack.c.bf16 %v499, %v499
    %v522 = vunpack.c.l.b16 %v502
    %v523 = vunpack.c.l.b16 %v503
    %v524 = vunpack.c.h.b16 %v502
    %v525 = vunpack.c.h.b16 %v503
    %v526 = vunpack.c.l.b16 %v504
    %v527 = vunpack.c.l.b16 %v505
    %v528 = vunpack.c.h.b16 %v504
    %v529 = vunpack.c.h.b16 %v505
    %v530 = vunpack.c.l.b16 %v506
    %v531 = vunpack.c.l.b16 %v507
    %v532 = vunpack.c.h.b16 %v506
    %v533 = vunpack.c.h.b16 %v507
    %v534 = vunpack.c.l.b16 %v508
    %v535 = vunpack.c.l.b16 %v509
    %v536 = vunpack.c.h.b16 %v508
    %v537 = vunpack.c.h.b16 %v509
    %v538 = vunpack.c.l.b16 %v510
    %v539 = vunpack.c.l.b16 %v511
    %v540 = vpack.c.b16 %v523, %v522
    %v541 = vpack.c.b16 %v525, %v524
    %v542 = vpack.c.b16 %v527, %v526
    %v543 = vpack.c.b16 %v529, %v528
    %v544 = vpack.c.b16 %v531, %v530
    %v545 = vpack.c.b16 %v533, %v532
    %v546 = vpack.c.b16 %v535, %v534
    %v547 = vpack.c.b16 %v537, %v536
    %v548 = vpack.c.b16 %v539, %v538
    %558 = vst [vmem:[#allocation3] sm:$0xff] %v540
    %559 = vst [vmem:[#allocation3 + $0x10] sm:$0xff] %v541
    %560 = vst [vmem:[#allocation3 + $0x20] sm:$0xff] %v542
    %561 = vst [vmem:[#allocation3 + $0x30] sm:$0xff] %v543
    %562 = vst [vmem:[#allocation3 + $0x40] sm:$0xff] %v544
    %563 = vst [vmem:[#allocation3 + $0x50] sm:$0xff] %v545
    %564 = vst [vmem:[#allocation3 + $0x60] sm:$0xff] %v546
    %565 = vst [vmem:[#allocation3 + $0x70] sm:$0xff] %v547
    %566 = vst [vmem:[#allocation3 + $0x80] sm:$0xff] %v548
    %v567 = vld [vmem:[#allocation2 + $0x18] sm:$0xff]
    %v568 = vld [vmem:[#allocation2 + $0x20] sm:$0xff]
    %v569 = vmul.f32 %v567, %v190
    %v570 = vmul.f32 %v568, %v194
    %v571 = vld [vmem:[#allocation2 + $0x28] sm:$0xff]
    %v572 = vmul.f32 %v567, %v357
    %v573 = vmul.f32 %v568, %v361
    %v574 = vmul.f32 %v571, %v359
    %v575 = vmul.f32 %v567, %v196
    %v576 = vmul.f32 %v568, %v199
    %v577 = vmul.f32 %v571, %v198
    %v578 = vmul.f32 %v567, %v260
    %v579 = vmul.f32 %v568, %v264
    %v580 = vmul.f32 %v571, %v262
    %v581 = vmul.f32 %v567, %v375
    %v582 = vmul.f32 %v568, %v379
    %v583 = vmul.f32 %v571, %v377
    %v584 = vmul.f32 %v567, %v387
    %v585 = vmul.f32 %v568, %v391
    %v586 = vmul.f32 %v571, %v389
    %590 = vrot.lane.b32.xlu0 %v567, 127
    %v591 = vpop.permute.xlu0 %590
    %592 = vrot.lane.b32.xlu0 %v568, 127
    %v593 = vpop.permute.xlu0 %592
    %594 = vrot.lane.b32.xlu0 %v571, 127
    %v595 = vpop.permute.xlu0 %594
    %v596 = vsel %vm407, %v591, %v593
    %v597 = vsel %vm407, %v593, %v595
    %603 = vrot.lane.b32.xlu0 %v572, 126
    %v604 = vpop.permute.xlu0 %603
    %605 = vrot.lane.b32.xlu0 %v573, 126
    %v606 = vpop.permute.xlu0 %605
    %607 = vrot.lane.b32.xlu0 %v574, 126
    %v608 = vpop.permute.xlu0 %607
    %v609 = vsel %vm292, %v604, %v606
    %v610 = vsel %vm292, %v606, %v608
    %616 = vrot.lane.b32.xlu0 %v575, 112
    %v617 = vpop.permute.xlu0 %616
    %618 = vrot.lane.b32.xlu0 %v576, 112
    %v619 = vpop.permute.xlu0 %618
    %620 = vrot.lane.b32.xlu0 %v577, 112
    %v621 = vpop.permute.xlu0 %620
    %v622 = vsel %vm434, %v617, %v619
    %v623 = vsel %vm434, %v619, %v621
    %626 = vrot.lane.b32.xlu0 %v567, 111
    %v627 = vpop.permute.xlu0 %626
    %628 = vrot.lane.b32.xlu0 %v568, 111
    %v629 = vpop.permute.xlu0 %628
    %630 = vrot.lane.b32.xlu0 %v571, 111
    %v631 = vpop.permute.xlu0 %630
    %v632 = vsel %vm445, %v627, %v629
    %v633 = vsel %vm445, %v629, %v631
    %639 = vrot.lane.b32.xlu0 %v578, 110
    %v640 = vpop.permute.xlu0 %639
    %641 = vrot.lane.b32.xlu0 %v579, 110
    %v642 = vpop.permute.xlu0 %641
    %643 = vrot.lane.b32.xlu0 %v580, 110
    %v644 = vpop.permute.xlu0 %643
    %v645 = vsel %vm459, %v640, %v642
    %v646 = vsel %vm459, %v642, %v644
    %652 = vrot.lane.b32.xlu0 %v581, 96
    %v653 = vpop.permute.xlu0 %652
    %654 = vrot.lane.b32.xlu0 %v582, 96
    %v655 = vpop.permute.xlu0 %654
    %656 = vrot.lane.b32.xlu0 %v583, 96
    %v657 = vpop.permute.xlu0 %656
    %v658 = vsel %vm128, %v653, %v655
    %v659 = vsel %vm128, %v655, %v657
    %662 = vrot.lane.b32.xlu0 %v567, 95
    %v663 = vpop.permute.xlu0 %662
    %664 = vrot.lane.b32.xlu0 %v568, 95
    %v665 = vpop.permute.xlu0 %664
    %666 = vrot.lane.b32.xlu0 %v571, 95
    %v667 = vpop.permute.xlu0 %666
    %v668 = vsel %vm483, %v663, %v665
    %v669 = vsel %vm483, %v665, %v667
    %675 = vrot.lane.b32.xlu0 %v584, 94
    %v676 = vpop.permute.xlu0 %675
    %677 = vrot.lane.b32.xlu0 %v585, 94
    %v678 = vpop.permute.xlu0 %677
    %679 = vrot.lane.b32.xlu0 %v586, 94
    %v680 = vpop.permute.xlu0 %679
    %v681 = vsel %vm497, %v676, %v678
    %v682 = vsel %vm497, %v678, %v680
    %v685 = vpack.c.bf16 %v596, %v569
    %v686 = vpack.c.bf16 %v597, %v570
    %v687 = vpack.c.bf16 %v622, %v609
    %v688 = vpack.c.bf16 %v623, %v610
    %v689 = vpack.c.bf16 %v645, %v632
    %v690 = vpack.c.bf16 %v646, %v633
    %v691 = vpack.c.bf16 %v668, %v658
    %v692 = vpack.c.bf16 %v669, %v659
    %v693 = vpack.c.bf16 %v681, %v681
    %v694 = vpack.c.bf16 %v682, %v682
    %v705 = vunpack.c.l.b16 %v685
    %v706 = vunpack.c.l.b16 %v686
    %v707 = vunpack.c.h.b16 %v685
    %v708 = vunpack.c.h.b16 %v686
    %v709 = vunpack.c.l.b16 %v687
    %v710 = vunpack.c.l.b16 %v688
    %v711 = vunpack.c.h.b16 %v687
    %v712 = vunpack.c.h.b16 %v688
    %v713 = vunpack.c.l.b16 %v689
    %v714 = vunpack.c.l.b16 %v690
    %v715 = vunpack.c.h.b16 %v689
    %v716 = vunpack.c.h.b16 %v690
    %v717 = vunpack.c.l.b16 %v691
    %v718 = vunpack.c.l.b16 %v692
    %v719 = vunpack.c.h.b16 %v691
    %v720 = vunpack.c.h.b16 %v692
    %v721 = vunpack.c.l.b16 %v693
    %v722 = vunpack.c.l.b16 %v694
    %v723 = vpack.c.b16 %v706, %v705
    %v724 = vpack.c.b16 %v708, %v707
    %v725 = vpack.c.b16 %v710, %v709
    %v726 = vpack.c.b16 %v712, %v711
    %v727 = vpack.c.b16 %v714, %v713
    %v728 = vpack.c.b16 %v716, %v715
    %v729 = vpack.c.b16 %v718, %v717
    %v730 = vpack.c.b16 %v720, %v719
    %v731 = vpack.c.b16 %v722, %v721
    %741 = vst [vmem:[#allocation3 + $0x8] sm:$0xff] %v723
    %742 = vst [vmem:[#allocation3 + $0x18] sm:$0xff] %v724
    %743 = vst [vmem:[#allocation3 + $0x28] sm:$0xff] %v725
    %744 = vst [vmem:[#allocation3 + $0x38] sm:$0xff] %v726
    %745 = vst [vmem:[#allocation3 + $0x48] sm:$0xff] %v727
    %746 = vst [vmem:[#allocation3 + $0x58] sm:$0xff] %v728
    %747 = vst [vmem:[#allocation3 + $0x68] sm:$0xff] %v729
    %748 = vst [vmem:[#allocation3 + $0x78] sm:$0xff] %v730
    %749 = vst [vmem:[#allocation3 + $0x88] sm:$0xff] %v731
    %v750 = vld [vmem:[%s1] sm:$0xf]
    %v751 = vld [vmem:[#allocation3] sm:$0xff]
    %v752 = vld [vmem:[#allocation3 + $0x8] sm:$0xff]
    %v753 = vld [vmem:[#allocation3 + $0x10] sm:$0xff]
    %v754 = vld [vmem:[#allocation3 + $0x18] sm:$0xff]
    %v755 = vld [vmem:[#allocation3 + $0x20] sm:$0xff]
    %v756 = vld [vmem:[#allocation3 + $0x28] sm:$0xff]
    %v757 = vld [vmem:[#allocation3 + $0x30] sm:$0xff]
    %v758 = vld [vmem:[#allocation3 + $0x38] sm:$0xff]
    %v759 = vld [vmem:[#allocation3 + $0x40] sm:$0xff]
    %v760 = vld [vmem:[#allocation3 + $0x48] sm:$0xff]
    %v761 = vld [vmem:[#allocation3 + $0x50] sm:$0xff]
    %v762 = vld [vmem:[#allocation3 + $0x58] sm:$0xff]
    %v763 = vld [vmem:[#allocation3 + $0x60] sm:$0xff]
    %v764 = vld [vmem:[#allocation3 + $0x68] sm:$0xff]
    %v765 = vld [vmem:[#allocation3 + $0x70] sm:$0xff]
    %v766 = vld [vmem:[#allocation3 + $0x78] sm:$0xff]
    %v767 = vld [vmem:[#allocation3 + $0x80] sm:$0xff]
    %v768 = vld [vmem:[#allocation3 + $0x88] sm:$0xff]
    %v787 = vunpack.c.l.b16 %v751
    %v788 = vunpack.c.h.b16 %v751
    %v789 = vunpack.c.l.b16 %v752
    %v790 = vunpack.c.h.b16 %v752
    %v791 = vunpack.c.l.b16 %v753
    %v792 = vunpack.c.h.b16 %v753
    %v793 = vunpack.c.l.b16 %v754
    %v794 = vunpack.c.h.b16 %v754
    %v795 = vunpack.c.l.b16 %v755
    %v796 = vunpack.c.h.b16 %v755
    %v797 = vunpack.c.l.b16 %v756
    %v798 = vunpack.c.h.b16 %v756
    %v799 = vunpack.c.l.b16 %v757
    %v800 = vunpack.c.h.b16 %v757
    %v801 = vunpack.c.l.b16 %v758
    %v802 = vunpack.c.h.b16 %v758
    %v803 = vunpack.c.l.b16 %v759
    %v804 = vunpack.c.h.b16 %v759
    %v805 = vunpack.c.l.b16 %v760
    %v806 = vunpack.c.h.b16 %v760
    %v807 = vunpack.c.l.b16 %v761
    %v808 = vunpack.c.h.b16 %v761
    %v809 = vunpack.c.l.b16 %v762
    %v810 = vunpack.c.h.b16 %v762
    %v811 = vunpack.c.l.b16 %v763
    %v812 = vunpack.c.h.b16 %v763
    %v813 = vunpack.c.l.b16 %v764
    %v814 = vunpack.c.h.b16 %v764
    %v815 = vunpack.c.l.b16 %v765
    %v816 = vunpack.c.h.b16 %v765
    %v817 = vunpack.c.l.b16 %v766
    %v818 = vunpack.c.h.b16 %v766
    %v819 = vunpack.c.l.b16 %v767
    %v820 = vunpack.c.h.b16 %v767
    %v821 = vunpack.c.l.b16 %v768
    %v822 = vunpack.c.h.b16 %v768
    %v823 = vpack.c.b16 %v791, %v787
    %v824 = vpack.c.b16 %v792, %v788
    %v825 = vpack.c.b16 %v793, %v789
    %v826 = vpack.c.b16 %v794, %v790
    %v827 = vpack.c.b16 %v799, %v795
    %v828 = vpack.c.b16 %v800, %v796
    %v829 = vpack.c.b16 %v801, %v797
    %v830 = vpack.c.b16 %v802, %v798
    %v831 = vpack.c.b16 %v807, %v803
    %v832 = vpack.c.b16 %v808, %v804
    %v833 = vpack.c.b16 %v809, %v805
    %v834 = vpack.c.b16 %v810, %v806
    %v835 = vpack.c.b16 %v815, %v811
    %v836 = vpack.c.b16 %v816, %v812
    %v837 = vpack.c.b16 %v817, %v813
    %v838 = vpack.c.b16 %v818, %v814
    %v839 = vpack.c.b16 %v819, %v819
    %v840 = vpack.c.b16 %v820, %v820
    %v841 = vpack.c.b16 %v821, %v821
    %v842 = vpack.c.b16 %v822, %v822
    %vm859 = vcmask 588800
    %v861 = vsel %vm859, %v750, 0
    %vm863 = vcmask 1043456
    %v865 = vsel %vm863, %v839, 0
    %v868 = vsel %vm863, %v840, 0
    %v871 = vsel %vm863, %v841, 0
    %v874 = vsel %vm863, %v842, 0
    %876 = vmatprep.subr.bf16.mxu0 %v824
    %877 = vmatpush1.bf16.msra.mxu0 %v823
    %878 = vmatprep.subr.bf16.mxu0 %v828
    %879 = vmatpush1.bf16.msra.mxu0 %v827
    %880 = vmatprep.subr.bf16.mxu0 %v832
    %881 = vmatpush1.bf16.msra.mxu0 %v831
    %882 = vmatprep.subr.bf16.mxu0 %v836
    %883 = vmatpush1.bf16.msra.mxu0 %v835
    %884 = vmatprep.subr.bf16.mxu0 %v868
    %885 = vmatpush1.bf16.msra.mxu0 %v865
    %886 = vmatprep.subr.bf16.mxu0 0
    %887 = vmatpush1.bf16.msra.mxu0 0
    %888 = vmatprep.subr.bf16.mxu0 0
    %889 = vmatpush1.bf16.msra.mxu0 0
    %890 = vmatprep.subr.bf16.mxu0 0
    %891 = vmatpush1.bf16.msra.mxu0 0
    %892 = vmatprep.subr.bf16.mxu0 0
    %893 = vmatpush1.bf16.msra.mxu0 0
    %894 = vmatprep.subr.bf16.mxu0 0
    %895 = vmatpush1.bf16.msra.mxu0 0
    %896 = vmatprep.subr.bf16.mxu0 0
    %897 = vmatpush1.bf16.msra.mxu0 0
    %898 = vmatprep.subr.bf16.mxu0 0
    %899 = vmatpush1.bf16.msra.mxu0 0
    %900 = vmatprep.subr.bf16.mxu0 0
    %901 = vmatpush1.bf16.msra.mxu0 0
    %902 = vmatprep.subr.bf16.mxu0 0
    %903 = vmatpush1.bf16.msra.mxu0 0
    %904 = vmatprep.subr.bf16.mxu0 0
    %905 = vmatpush1.bf16.msra.mxu0 0
    %906 = vmatprep.subr.bf16.mxu0 0
    %907 = vmatpush1.bf16.msra.mxu0 0
    %908 = vmatprep.mubr.bf16.mxu0 0
    %909 = vmatmul.mubr.bf16.gmra.mrb[0].mxu0 %v861
    %v910 = vpop.f32.mrb[0].mxu0
    %v911 = vadd.f32 0.0, %v910
    %v912 = vpop.f32.mrb[0].mxu0
    %v913 = vadd.f32 0.0, %v912
    %v914 = vpop.f32.mrb[0].mxu0
    %v915 = vpop.f32.mrb[0].mxu0
    %916 = vdwg.mxu0
    %917 = vmatprep.subr.bf16.mxu0 %v826
    %918 = vmatpush1.bf16.msra.mxu0 %v825
    %919 = vmatprep.subr.bf16.mxu0 %v830
    %920 = vmatpush1.bf16.msra.mxu0 %v829
    %921 = vmatprep.subr.bf16.mxu0 %v834
    %922 = vmatpush1.bf16.msra.mxu0 %v833
    %923 = vmatprep.subr.bf16.mxu0 %v838
    %924 = vmatpush1.bf16.msra.mxu0 %v837
    %925 = vmatprep.subr.bf16.mxu0 %v874
    %926 = vmatpush1.bf16.msra.mxu0 %v871
    %927 = vmatprep.subr.bf16.mxu0 0
    %928 = vmatpush1.bf16.msra.mxu0 0
    %929 = vmatprep.subr.bf16.mxu0 0
    %930 = vmatpush1.bf16.msra.mxu0 0
    %931 = vmatprep.subr.bf16.mxu0 0
    %932 = vmatpush1.bf16.msra.mxu0 0
    %933 = vmatprep.subr.bf16.mxu0 0
    %934 = vmatpush1.bf16.msra.mxu0 0
    %935 = vmatprep.subr.bf16.mxu0 0
    %936 = vmatpush1.bf16.msra.mxu0 0
    %937 = vmatprep.subr.bf16.mxu0 0
    %938 = vmatpush1.bf16.msra.mxu0 0
    %939 = vmatprep.subr.bf16.mxu0 0
    %940 = vmatpush1.bf16.msra.mxu0 0
    %941 = vmatprep.subr.bf16.mxu0 0
    %942 = vmatpush1.bf16.msra.mxu0 0
    %943 = vmatprep.subr.bf16.mxu0 0
    %944 = vmatpush1.bf16.msra.mxu0 0
    %945 = vmatprep.subr.bf16.mxu0 0
    %946 = vmatpush1.bf16.msra.mxu0 0
    %947 = vmatprep.subr.bf16.mxu0 0
    %948 = vmatpush1.bf16.msra.mxu0 0
    %949 = vmatprep.mubr.bf16.mxu0 0
    %950 = vmatmul.mubr.bf16.gmra.mrb[0].mxu0 %v861
    %v951 = vpop.f32.mrb[0].mxu0
    %v952 = vadd.f32 0.0, %v951
    %v953 = vpop.f32.mrb[0].mxu0
    %v954 = vadd.f32 0.0, %v953
    %v955 = vpop.f32.mrb[0].mxu0
    %v956 = vpop.f32.mrb[0].mxu0
    %957 = vdwg.mxu0
    %v958 = vld [vmem:[%s2] sm:$0xff]
    %960 = vset.pattern.permute.xlu0 0
    %961 = vperm.xlu0 %960, %v958
    %v962 = vpop.permute.xlu0 %961
    %v964 = vadd.f32 %v911, %v962
    %v965 = vadd.f32 %v913, %v962
    %966 = vst [vmem:[#allocation7] sm:$0xff] %v964
    %967 = vst [vmem:[#allocation7 + $0x8] sm:$0xff] %v965
    %v968 = vadd.f32 %v952, %v962
    %v969 = vadd.f32 %v954, %v962
    %s970 = scalar_lea.vmem [#allocation7], 16
    %971 = vst [vmem:[%s970] sm:$0xff] %v968
    %972 = vst [vmem:[%s970 + $0x8] sm:$0xff] %v969
    // Predicated region
    $region22: #{tpu_custom_call.1} parent=1 // pred_check
      _
    $region23: #{tpu_custom_call.1} parent=1 // pred_check_branch
      %974 = sbr.rel (0) target = $region25
    $region24: #{tpu_custom_call.1} parent=1 // pred_region
      %s976 = ssub.s32 512, 512
      %977 = vsyncadd [#allocation6], %s976
      %s978 = sshll.u32 [#allocation7], 4
      %s979 = int_to_ptr.vmem [resolvable:$true] %s978
      %984 = dma.vmem_to_hbm [thread:$0]  %s979, 512, %s4, [#allocation6], 256, 256, 16
    $region25: #{tpu_custom_call.1} parent=1 // pred_fallthru
      _
    // Predicated region
    $region26: #{tpu_custom_call.1} parent=1 // pred_check
      _
    $region27: #{tpu_custom_call.1} parent=1 // pred_check_branch
      %986 = sbr.rel (0) target = $region29
    $region28: #{tpu_custom_call.1} parent=1 // pred_region
      %987 = dma.done [#allocation6], 512
    $region29: #{tpu_custom_call.1} parent=1 // pred_fallthru
      _
    %988 = vsyncpa [#allocation5], 1
    %989 = vsyncpa [#allocation6], 1

</llo_original>
